<compile_context>
chip_gen: v7x
topology: tpu7x:2x2x1
jax: 0.10.0
libtpu: 0.0.40
codegen_flags: <defaults>
</compile_context>

<pallas_src>
import jax
import jax.numpy as jnp
from jax.experimental import pallas as pl
from jax.experimental.pallas import tpu as pltpu


def _build_weights(z_vector: jnp.ndarray) -> jnp.ndarray:
    """Replicates the PyTorch __init__ weight construction (forward module). Returns (Z, 3) f32."""
    z = z_vector.astype(jnp.float32)
    n = z.shape[0]

    dz_m1_full = jnp.concatenate([jnp.zeros((1,), jnp.float32), z[1:] - z[:-1]])   # dz_m1_list
    dz_m2_full = jnp.concatenate([jnp.zeros((2,), jnp.float32), z[2:] - z[:-2]])   # dz_m2_list

    # rows 2 .. n-1
    dz_m1 = dz_m1_full[2:]                    # z[i] - z[i-1]
    dz_m2 = dz_m2_full[2:] - dz_m1            # z[i-1] - z[i-2]
    factor = -dz_m1 * (dz_m1 + dz_m2) / dz_m2
    w0 = -factor / (dz_m2 + dz_m1) ** 2
    w1 = factor / dz_m1 ** 2
    w2 = factor / (dz_m2 + dz_m1) ** 2 - factor / dz_m1 ** 2
    rest = jnp.stack([w0, w1, w2], axis=1)                               # (n-2, 3)

    row0 = jnp.zeros((1, 3), jnp.float32)
    dz1 = z[1] - z[0]
    row1 = jnp.stack([jnp.zeros((), jnp.float32), -1.0 / dz1, 1.0 / dz1])[None, :]

    return jnp.concatenate([row0, row1, rest], axis=0)                   # (n, 3)


def _diff_kernel(u_ref, w_ref, o_ref):
    # u_ref / o_ref: (tv, Z) tiles.  w_ref: (8, Z) resident block, taps in rows 0..2.
    u = u_ref[...]                                   # (tv, Z)
    u_m1 = pltpu.roll(u, 1, 1)                       # u[:, z-1]  (circular; wrap hits zero weight)
    u_m2 = pltpu.roll(u, 2, 1)                       # u[:, z-2]
    o_ref[...] = (u_m2 * w_ref[0:1, :]               # W[:, 0] -> broadcasts over V
                  + u_m1 * w_ref[1:2, :]             # W[:, 1]
                  + u * w_ref[2:3, :])               # W[:, 2]


def _choose_tv(V: int, Z: int, budget_bytes: int = 2 << 20) -> int:
    """Largest V-tile that divides V, is a multiple of 8 (or == V), and fits ~budget_bytes."""
    if V <= 8:
        return V
    max_rows = max(8, (budget_bytes // (Z * 4)) // 8 * 8)
    tv = min(V, max_rows)
    tv = max(8, tv - (tv % 8))
    while tv > 8 and V % tv != 0:
        tv -= 8
    if V % tv != 0:
        tv = V      # full-extent block is always legal
    return tv


def order2_diff1_unstructure_forward(u: jnp.ndarray, weights_all: jnp.ndarray,
                                     tv: int | None = None) -> jnp.ndarray:
    """u: (V, Z) float32, weights_all: (Z, 3) float32 -> (V, Z) float32."""
    V, Z = u.shape
    u = u.astype(jnp.float32)

    # (3, Z) lane-aligned taps, padded to a full (8, Z) sublane block (fetched once, resident).
    w_pad = jnp.zeros((8, Z), jnp.float32).at[0:3, :].set(weights_all.T.astype(jnp.float32))

    if tv is None:
        tv = _choose_tv(V, Z)
    assert V % tv == 0

    grid = (V // tv,)
    tile_spec = pl.BlockSpec((tv, Z), lambda i: (i, 0))
    w_spec = pl.BlockSpec((8, Z), lambda i: (0, 0))

    cost = pl.CostEstimate(flops=5 * V * Z,
                           transcendentals=0,
                           bytes_accessed=(2 * V * Z + 8 * Z) * 4)

    return pl.pallas_call(
        _diff_kernel,
        out_shape=jax.ShapeDtypeStruct((V, Z), jnp.float32),
        grid_spec=pltpu.PrefetchScalarGridSpec(
            num_scalar_prefetch=0,
            grid=grid,
            in_specs=[tile_spec, w_spec],
            out_specs=tile_spec,
        ),
        compiler_params=pltpu.CompilerParams(
            dimension_semantics=("parallel",)),
        cost_estimate=cost,
    )(u, w_pad)


def _reference(u, weights_all):
    u_m1 = jnp.roll(u, 1, axis=1)
    u_m2 = jnp.roll(u, 2, axis=1)
    u_pad = jnp.stack([u_m2, u_m1, u], axis=-1)            # (V, Z, 3)  == torch.stack(..., dim=2)
    return jnp.einsum('vzt,zt->vz', u_pad, weights_all)    # (V, Z)


if __name__ == "__main__":
    key = jax.random.PRNGKey(0)
    k_z, k_u = jax.random.split(key)

    V, Z = 8, 128
    # non-uniform strictly-increasing vertical grid
    dz = jax.random.uniform(k_z, (Z,), minval=0.1, maxval=1.0, dtype=jnp.float32)
    z_vector = jnp.cumsum(dz)

    weights_all = _build_weights(z_vector)                 # (Z, 3)
    u = jax.random.normal(k_u, (V, Z), dtype=jnp.float32)

    out = order2_diff1_unstructure_forward(u, weights_all)
    out = jax.block_until_ready(out)

    ref = _reference(u, weights_all)
    assert out.shape == (V, Z) and out.dtype == jnp.float32
    assert jnp.allclose(out, ref, atol=1e-4, rtol=1e-4), "mismatch vs reference"

    print("KERNEL_OK")
</pallas_src>

<mosaic_0001>
module attributes {stable_mosaic.version = 11 : i64} {
  func.func @_diff_kernel(%arg0: i32, %arg1: memref<8x128xf32, #tpu.memory_space<vmem>>, %arg2: memref<8x128xf32, #tpu.memory_space<vmem>>, %arg3: memref<8x128xf32, #tpu.memory_space<vmem>>) attributes {dimension_semantics = [#tpu.dimension_semantics<parallel>], iteration_bounds = array<i64: 1>, scalar_prefetch = 0 : i64, scratch_operands = 0 : i64, tpu.core_type = #tpu.core_type<tc>, window_params = [{transform_indices = @transform_0, window_bounds = array<i64: 8, 128>}, {pipeline_mode = #tpu.pipeline_mode<synchronous>, transform_indices = @transform_1, window_bounds = array<i64: 8, 128>}, {transform_indices = @transform_2, window_bounds = array<i64: 8, 128>}]} {
    %c0 = arith.constant 0 : index
    %c0_0 = arith.constant 0 : index
    %0 = vector.load %arg1[%c0, %c0_0] : memref<8x128xf32, #tpu.memory_space<vmem>>, vector<8x128xf32>
    %c1_i32 = arith.constant 1 : i32
    %1 = tpu.dynamic_rotate %0 by %c1_i32 dim 1 : vector<8x128xf32>, i32 -> vector<8x128xf32>
    %c2_i32 = arith.constant 2 : i32
    %2 = tpu.dynamic_rotate %0 by %c2_i32 dim 1 : vector<8x128xf32>, i32 -> vector<8x128xf32>
    %c0_1 = arith.constant 0 : index
    %c0_2 = arith.constant 0 : index
    %3 = vector.load %arg2[%c0_1, %c0_2] : memref<8x128xf32, #tpu.memory_space<vmem>>, vector<1x128xf32>
    %4 = vector.broadcast %3 : vector<1x128xf32> to vector<8x128xf32>
    %5 = arith.mulf %2, %4 : vector<8x128xf32>
    %c1 = arith.constant 1 : index
    %c0_3 = arith.constant 0 : index
    %6 = vector.load %arg2[%c1, %c0_3] : memref<8x128xf32, #tpu.memory_space<vmem>>, vector<1x128xf32>
    %7 = vector.broadcast %6 : vector<1x128xf32> to vector<8x128xf32>
    %8 = arith.mulf %1, %7 : vector<8x128xf32>
    %9 = arith.addf %5, %8 : vector<8x128xf32>
    %c2 = arith.constant 2 : index
    %c0_4 = arith.constant 0 : index
    %10 = vector.load %arg2[%c2, %c0_4] : memref<8x128xf32, #tpu.memory_space<vmem>>, vector<1x128xf32>
    %11 = vector.broadcast %10 : vector<1x128xf32> to vector<8x128xf32>
    %12 = arith.mulf %0, %11 : vector<8x128xf32>
    %13 = arith.addf %9, %12 : vector<8x128xf32>
    %c0_5 = arith.constant 0 : index
    %c0_6 = arith.constant 0 : index
    %14 = vector.load %arg3[%c0_5, %c0_6] : memref<8x128xf32, #tpu.memory_space<vmem>>, vector<8x128xf32>
    tpu.vector_store %arg3[%c0_5, %c0_6], %13 {strides = array<i32>} : memref<8x128xf32, #tpu.memory_space<vmem>>, vector<8x128xf32>,
    return
  }
  func.func @transform_0(%arg0: i32) -> (i32, i32) {
    %c0_i32 = arith.constant 0 : i32
    %c0_i32_0 = arith.constant 0 : i32
    return %arg0, %c0_i32 : i32, i32
  }
  func.func @transform_1(%arg0: i32) -> (i32, i32) {
    %c0_i32 = arith.constant 0 : i32
    %c0_i32_0 = arith.constant 0 : i32
    %c0_i32_1 = arith.constant 0 : i32
    return %c0_i32, %c0_i32_0 : i32, i32
  }
  func.func @transform_2(%arg0: i32) -> (i32, i32) {
    %c0_i32 = arith.constant 0 : i32
    %c0_i32_0 = arith.constant 0 : i32
    return %arg0, %c0_i32 : i32, i32
  }
}

</mosaic_0001>

<llo_original>
// kernel: tpu_custom_call.1
$region0: #{tpu_custom_call.1}
  #allocation0 [shape = 'u32[]', space=smem, size = 0x4, offset = 0x4, fixed_abs, tag = 'smem constant byte address 0x4 - core index']
  #allocation1 [shape = 'u32[144,128]{1,0:T(1,128)}', space=vmem, size = 0x12000, scoped, tag = 'internal scratch']
  %s0 = inlined_call_operand.hbm [shape: f32[8,128], index: 0, kind: input, shape index: {}]
  %s1 = inlined_call_operand.hbm [shape: f32[8,128], index: 1, kind: input, shape index: {}]
  %s2 = inlined_call_operand.hbm [shape: f32[8,128], index: 2, kind: output, shape index: {}]
  %s3 = sld [smem:[#allocation0]]
  $region26: #{tpu_custom_call.1} parent=0
    _
  %s5 = ssub.s32 1, %s3
  %s6 = scalar_select 0, %s5, %s3
  $region1: #{tpu_custom_call.1} parent=0
    #allocation2 [shape = 'u8[4096]{0}', space=vmem, size = 0x1000, scoped, tag = 'input window, operand 0, single buffered']
    #allocation3 [shape = 's32[1]{0}', space=sflag, size = 0x4, scoped, tag = 'scoped memory for tpu_custom_call.1']
    #allocation4 [shape = 's32[1]{0}', space=sflag, size = 0x4, scoped, tag = 'scoped memory for tpu_custom_call.1']
    #allocation5 [shape = 'u8[4096]{0}', space=vmem, size = 0x1000, scoped, tag = 'input window, operand 1, single buffered']
    #allocation6 [shape = 's32[1]{0}', space=sflag, size = 0x4, scoped, tag = 'scoped memory for tpu_custom_call.1']
    #allocation7 [shape = 'u8[4096]{0}', space=vmem, size = 0x1000, scoped, tag = 'output window, operand 0, single buffered']
    %7 = vsyncpa [#allocation3], 0
    %8 = vsyncpa [#allocation6], 0
    %9 = vsyncpa [#allocation4], 0
    // Predicated region
    $region2: #{tpu_custom_call.1} parent=1 // pred_check
      _
    $region3: #{tpu_custom_call.1} parent=1 // pred_check_branch
      %11 = sbr.rel (0) target = $region5
    $region4: #{tpu_custom_call.1} parent=1 // pred_region
      %s13 = ssub.s32 128, 128
      %14 = vsyncadd [#allocation3], %s13
      %s16 = sshll.u32 [#allocation2], 4
      %s17 = int_to_ptr.vmem [resolvable:$true] %s16
      %19 = dma.hbm_to_vmem [thread:$0]  %s0, 128, %s17, [#allocation3]
    $region5: #{tpu_custom_call.1} parent=1 // pred_fallthru
      _
    // Predicated region
    $region6: #{tpu_custom_call.1} parent=1 // pred_check
      _
    $region7: #{tpu_custom_call.1} parent=1 // pred_check_branch
      %21 = sbr.rel (0) target = $region9
    $region8: #{tpu_custom_call.1} parent=1 // pred_region
      %s23 = ssub.s32 128, 128
      %24 = vsyncadd [#allocation6], %s23
      %s26 = sshll.u32 [#allocation5], 4
      %s27 = int_to_ptr.vmem [resolvable:$true] %s26
      %29 = dma.hbm_to_vmem [thread:$0]  %s1, 128, %s27, [#allocation6]
    $region9: #{tpu_custom_call.1} parent=1 // pred_fallthru
      _
    // Predicated region
    $region10: #{tpu_custom_call.1} parent=1 // pred_check
      _
    $region11: #{tpu_custom_call.1} parent=1 // pred_check_branch
      %31 = sbr.rel (0) target = $region13
    $region12: #{tpu_custom_call.1} parent=1 // pred_region
      %32 = dma.done [#allocation3], 128
    $region13: #{tpu_custom_call.1} parent=1 // pred_fallthru
      _
    // Predicated region
    $region14: #{tpu_custom_call.1} parent=1 // pred_check
      _
    $region15: #{tpu_custom_call.1} parent=1 // pred_check_branch
      %34 = sbr.rel (0) target = $region17
    $region16: #{tpu_custom_call.1} parent=1 // pred_region
      %35 = dma.done [#allocation6], 128
    $region17: #{tpu_custom_call.1} parent=1 // pred_fallthru
      _
    %v36 = vld [vmem:[#allocation2] sm:$0xff]
    %37 = vrot.lane.b32.xlu0 %v36, 1
    %v38 = vpop.permute.xlu0 %37
    %39 = vrot.lane.b32.xlu0 %v36, 2
    %v40 = vpop.permute.xlu0 %39
    %v41 = vld [vmem:[#allocation5] sm:$0x1]
    %v42 = vlaneseq
    %v43 = vshrl.u32 %v42, 7
    %v44 = vsub.s32 0, %v43
    %v45 = vrot.slane %v41, %v44
    %v46 = vmul.f32 %v40, %v45
    %v47 = vld [vmem:[#allocation5 + $0x1] sm:$0x1]
    %v48 = vlaneseq
    %v49 = vshrl.u32 %v48, 7
    %v50 = vsub.s32 0, %v49
    %v51 = vrot.slane %v47, %v50
    %v52 = vmul.f32 %v38, %v51
    %v53 = vadd.f32 %v46, %v52
    %v54 = vld [vmem:[#allocation5 + $0x2] sm:$0x1]
    %v55 = vlaneseq
    %v56 = vshrl.u32 %v55, 7
    %v57 = vsub.s32 0, %v56
    %v58 = vrot.slane %v54, %v57
    %v59 = vmul.f32 %v36, %v58
    %v60 = vadd.f32 %v53, %v59
    %61 = vst [vmem:[#allocation7] sm:$0xff] %v60
    // Predicated region
    $region18: #{tpu_custom_call.1} parent=1 // pred_check
      _
    $region19: #{tpu_custom_call.1} parent=1 // pred_check_branch
      %63 = sbr.rel (0) target = $region21
    $region20: #{tpu_custom_call.1} parent=1 // pred_region
      %s65 = ssub.s32 128, 128
      %66 = vsyncadd [#allocation4], %s65
      %s68 = sshll.u32 [#allocation7], 4
      %s69 = int_to_ptr.vmem [resolvable:$true] %s68
      %71 = dma.vmem_to_hbm [thread:$0]  %s69, 128, %s2, [#allocation4]
    $region21: #{tpu_custom_call.1} parent=1 // pred_fallthru
      _
    // Predicated region
    $region22: #{tpu_custom_call.1} parent=1 // pred_check
      _
    $region23: #{tpu_custom_call.1} parent=1 // pred_check_branch
      %73 = sbr.rel (0) target = $region25
    $region24: #{tpu_custom_call.1} parent=1 // pred_region
      %74 = dma.done [#allocation4], 128
    $region25: #{tpu_custom_call.1} parent=1 // pred_fallthru
      _
    %75 = vsyncpa [#allocation3], 1
    %76 = vsyncpa [#allocation6], 1
    %77 = vsyncpa [#allocation4], 1

</llo_original>
